<compile_context>
chip_gen: v7x
topology: tpu7x:2x2x1
jax: 0.10.0
libtpu: 0.0.40
codegen_flags: <defaults>
</compile_context>

<pallas_src>
import jax
import jax.numpy as jnp
from jax.experimental import pallas as pl
from jax.experimental.pallas import tpu as pltpu


def temporal_attention_kernel(w_ref, h_ref, out_ref):
    # Single invocation: all refs are full arrays resident in VMEM.
    w = w_ref[...]                                   # (d, d), loaded once
    B = h_ref.shape[0]
    for b in range(B):                               # static unroll, B is tiny
        logits = jnp.dot(w, h_ref[b],
                         preferred_element_type=jnp.float32)   # (d, M) on the MXU
        m = jnp.max(logits, axis=-1, keepdims=True)
        e = jnp.exp(logits - m)
        denom = jnp.sum(e, axis=-1, keepdims=True)
        # Approx reciprocal -> EUP slot (free here); VALU only does the multiply.
        out_ref[b] = e * pl.reciprocal(denom, approx=True)


def temporal_attention(w_ta, h_t_prev):
    B, d, M = h_t_prev.shape
    assert w_ta.shape == (d, d)
    return pl.pallas_call(
        temporal_attention_kernel,
        out_shape=jax.ShapeDtypeStruct((B, d, M), jnp.float32),
        # No grid: one step, whole arrays in VMEM (the entire problem is KB-scale).
        in_specs=[
            pl.BlockSpec(memory_space=pltpu.MemorySpace.VMEM),   # w_ta (d, d)
            pl.BlockSpec(memory_space=pltpu.MemorySpace.VMEM),   # h_t_prev (B, d, M)
        ],
        out_specs=pl.BlockSpec(memory_space=pltpu.MemorySpace.VMEM),
    )(w_ta, h_t_prev)


def reference(w_ta, h_t_prev):
    # Pure-JAX reference mirroring the PyTorch forward (tanh result is discarded).
    logits = jnp.einsum('ij,bjm->bim', w_ta, h_t_prev)
    return jax.nn.softmax(logits, axis=-1)


if __name__ == "__main__":
    B, d, M = 2, 32, 8   # batch=2, feature dim d=32, M=8 recent frames

    key = jax.random.PRNGKey(0)
    k_w, k_h = jax.random.split(key)
    # Deterministic parameter init matching nn.Parameter(randn(d, d)) * 0.01
    w_ta = jax.random.normal(k_w, (d, d), dtype=jnp.float32) * 0.01
    h_t_prev = jax.random.normal(k_h, (B, d, M), dtype=jnp.float32)

    beta_t = temporal_attention(w_ta, h_t_prev)
    jax.block_until_ready(beta_t)

    ref = reference(w_ta, h_t_prev)
    assert beta_t.shape == (B, d, M)
    # Tolerance accounts for the approx (EUP) reciprocal in the softmax denominator.
    assert jnp.allclose(beta_t, ref, atol=1e-3, rtol=1e-3), "mismatch vs reference"

    print("KERNEL_OK")
</pallas_src>

<mosaic_0001>
module attributes {stable_mosaic.version = 11 : i64} {
  func.func @temporal_attention_kernel(%arg0: memref<32x32xf32, #tpu.memory_space<vmem>>, %arg1: memref<2x32x8xf32, #tpu.memory_space<vmem>>, %arg2: memref<2x32x8xf32, #tpu.memory_space<vmem>>) attributes {dimension_semantics = [], scalar_prefetch = 0 : i64, scratch_operands = 0 : i64, tpu.core_type = #tpu.core_type<tc>} {
    %c0 = arith.constant 0 : index
    %c0_0 = arith.constant 0 : index
    %0 = vector.load %arg0[%c0, %c0_0] : memref<32x32xf32, #tpu.memory_space<vmem>>, vector<32x32xf32>
    %c0_1 = arith.constant 0 : index
    %c0_2 = arith.constant 0 : index
    %c0_3 = arith.constant 0 : index
    %1 = vector.load %arg1[%c0_1, %c0_2, %c0_3] : memref<2x32x8xf32, #tpu.memory_space<vmem>>, vector<1x32x8xf32>
    %2 = vector.shape_cast %1 : vector<1x32x8xf32> to vector<32x8xf32>
    %cst = arith.constant dense<0.000000e+00> : vector<32x8xf32>
    %3 = tpu.matmul %0, %2, %cst {dimension_numbers = #tpu.dot_dimension_numbers<[1], [0], [0], [1], [0, 0, 1, 1], [], []>} : vector<32x32xf32>, vector<32x8xf32>, vector<32x8xf32> -> vector<32x8xf32>
    %cst_4 = arith.constant dense<0xFF800000> : vector<32xf32>
    %4 = vector.multi_reduction <maximumf>, %3, %cst_4 [1] : vector<32x8xf32> to vector<32xf32>
    %5 = vector.shape_cast %4 : vector<32xf32> to vector<32x1xf32>
    %6 = vector.broadcast %5 : vector<32x1xf32> to vector<32x8xf32>
    %7 = arith.subf %3, %6 : vector<32x8xf32>
    %8 = math.exp %7 : vector<32x8xf32>
    %cst_5 = arith.constant dense<0.000000e+00> : vector<32xf32>
    %9 = vector.multi_reduction <add>, %8, %cst_5 [1] : vector<32x8xf32> to vector<32xf32>
    %10 = vector.shape_cast %9 : vector<32xf32> to vector<32x1xf32>
    %11 = tpu.reciprocal %10 {approx = true} : vector<32x1xf32> -> vector<32x1xf32>
    %12 = vector.broadcast %11 : vector<32x1xf32> to vector<32x8xf32>
    %13 = arith.mulf %8, %12 : vector<32x8xf32>
    %c0_6 = arith.constant 0 : index
    %c0_7 = arith.constant 0 : index
    %c0_8 = arith.constant 0 : index
    %14 = vector.load %arg2[%c0_6, %c0_7, %c0_8] : memref<2x32x8xf32, #tpu.memory_space<vmem>>, vector<1x32x8xf32>
    %15 = vector.shape_cast %14 : vector<1x32x8xf32> to vector<32x8xf32>
    %16 = vector.shape_cast %13 : vector<32x8xf32> to vector<1x32x8xf32>
    tpu.vector_store %arg2[%c0_6, %c0_7, %c0_8], %16 {strides = array<i32>} : memref<2x32x8xf32, #tpu.memory_space<vmem>>, vector<1x32x8xf32>,
    %c1 = arith.constant 1 : index
    %c0_9 = arith.constant 0 : index
    %c0_10 = arith.constant 0 : index
    %17 = vector.load %arg1[%c1, %c0_9, %c0_10] : memref<2x32x8xf32, #tpu.memory_space<vmem>>, vector<1x32x8xf32>
    %18 = vector.shape_cast %17 : vector<1x32x8xf32> to vector<32x8xf32>
    %cst_11 = arith.constant dense<0.000000e+00> : vector<32x8xf32>
    %19 = tpu.matmul %0, %18, %cst_11 {dimension_numbers = #tpu.dot_dimension_numbers<[1], [0], [0], [1], [0, 0, 1, 1], [], []>} : vector<32x32xf32>, vector<32x8xf32>, vector<32x8xf32> -> vector<32x8xf32>
    %cst_12 = arith.constant dense<0xFF800000> : vector<32xf32>
    %20 = vector.multi_reduction <maximumf>, %19, %cst_12 [1] : vector<32x8xf32> to vector<32xf32>
    %21 = vector.shape_cast %20 : vector<32xf32> to vector<32x1xf32>
    %22 = vector.broadcast %21 : vector<32x1xf32> to vector<32x8xf32>
    %23 = arith.subf %19, %22 : vector<32x8xf32>
    %24 = math.exp %23 : vector<32x8xf32>
    %cst_13 = arith.constant dense<0.000000e+00> : vector<32xf32>
    %25 = vector.multi_reduction <add>, %24, %cst_13 [1] : vector<32x8xf32> to vector<32xf32>
    %26 = vector.shape_cast %25 : vector<32xf32> to vector<32x1xf32>
    %27 = tpu.reciprocal %26 {approx = true} : vector<32x1xf32> -> vector<32x1xf32>
    %28 = vector.broadcast %27 : vector<32x1xf32> to vector<32x8xf32>
    %29 = arith.mulf %24, %28 : vector<32x8xf32>
    %c1_14 = arith.constant 1 : index
    %c0_15 = arith.constant 0 : index
    %c0_16 = arith.constant 0 : index
    %30 = vector.load %arg2[%c1_14, %c0_15, %c0_16] : memref<2x32x8xf32, #tpu.memory_space<vmem>>, vector<1x32x8xf32>
    %31 = vector.shape_cast %30 : vector<1x32x8xf32> to vector<32x8xf32>
    %32 = vector.shape_cast %29 : vector<32x8xf32> to vector<1x32x8xf32>
    tpu.vector_store %arg2[%c1_14, %c0_15, %c0_16], %32 {strides = array<i32>} : memref<2x32x8xf32, #tpu.memory_space<vmem>>, vector<1x32x8xf32>,
    return
  }
}

</mosaic_0001>

<llo_original>
// kernel: tpu_custom_call.1
$region0: #{tpu_custom_call.1}
  #allocation0 [shape = 'u32[]', space=smem, size = 0x4, offset = 0x4, fixed_abs, tag = 'smem constant byte address 0x4 - core index']
  #allocation1 [shape = 'u32[144,128]{1,0:T(1,128)}', space=vmem, size = 0x12000, scoped, tag = 'internal scratch']
  %s0 = inlined_call_operand.vmem [shape: f32[32,32], index: 0, kind: input, shape index: {}]
  %s1 = inlined_call_operand.vmem [shape: f32[2,32,8], index: 1, kind: input, shape index: {}]
  %s2 = inlined_call_operand.vmem [shape: f32[2,32,8], index: 2, kind: output, shape index: {}]
  %s3 = sld [smem:[#allocation0]]
  $region18: #{tpu_custom_call.1} parent=0
    _
  %s5 = ssub.s32 1, %s3
  %s6 = scalar_select 0, %s5, %s3
  // Predicated region
  $region2: #{tpu_custom_call.1} parent=0 // pred_check
    _
  $region3: #{tpu_custom_call.1} parent=0 // pred_check_branch
    %8 = sbr.rel (0) target = $region5
  $region4: #{tpu_custom_call.1} parent=0 // pred_region
    _
  $region5: #{tpu_custom_call.1} parent=0 // pred_fallthru
    _
  // Predicated region
  $region6: #{tpu_custom_call.1} parent=0 // pred_check
    _
  $region7: #{tpu_custom_call.1} parent=0 // pred_check_branch
    %10 = sbr.rel (0) target = $region9
  $region8: #{tpu_custom_call.1} parent=0 // pred_region
    _
  $region9: #{tpu_custom_call.1} parent=0 // pred_fallthru
    _
  %v11 = vld [vmem:[%s0] sm:$0xff]
  %v12 = vld [vmem:[%s0 + $0x8] sm:$0xff]
  %v13 = vld [vmem:[%s0 + $0x10] sm:$0xff]
  %v14 = vld [vmem:[%s0 + $0x18] sm:$0xff]
  %v15 = vld [vmem:[%s1] sm:$0xff]
  %v16 = vld [vmem:[%s1 + $0x8] sm:$0xff]
  %v17 = vld [vmem:[%s1 + $0x10] sm:$0xff]
  %v18 = vld [vmem:[%s1 + $0x18] sm:$0xff]
  %vm19 = vcmask 261120
  %v21 = vsel %vm19, %v11, 0
  %v24 = vsel %vm19, %v12, 0
  %v27 = vsel %vm19, %v13, 0
  %v30 = vsel %vm19, %v14, 0
  %32 = vmatprep.subr.mxu0 0.0
  %33 = vmatpush1.msra.mxu0 %v15
  %34 = vmatprep.subr.mxu0 0.0
  %35 = vmatpush1.msra.mxu0 %v16
  %36 = vmatprep.subr.mxu0 0.0
  %37 = vmatpush1.msra.mxu0 %v17
  %38 = vmatprep.subr.mxu0 0.0
  %39 = vmatpush1.msra.mxu0 %v18
  %40 = vmatprep.subr.mxu0 0.0
  %41 = vmatpush1.msra.mxu0 0.0
  %42 = vmatprep.subr.mxu0 0.0
  %43 = vmatpush1.msra.mxu0 0.0
  %44 = vmatprep.subr.mxu0 0.0
  %45 = vmatpush1.msra.mxu0 0.0
  %46 = vmatprep.subr.mxu0 0.0
  %47 = vmatpush1.msra.mxu0 0.0
  %48 = vmatprep.subr.mxu0 0.0
  %49 = vmatpush1.msra.mxu0 0.0
  %50 = vmatprep.subr.mxu0 0.0
  %51 = vmatpush1.msra.mxu0 0.0
  %52 = vmatprep.subr.mxu0 0.0
  %53 = vmatpush1.msra.mxu0 0.0
  %54 = vmatprep.subr.mxu0 0.0
  %55 = vmatpush1.msra.mxu0 0.0
  %56 = vmatprep.subr.mxu0 0.0
  %57 = vmatpush1.msra.mxu0 0.0
  %58 = vmatprep.subr.mxu0 0.0
  %59 = vmatpush1.msra.mxu0 0.0
  %60 = vmatprep.subr.mxu0 0.0
  %61 = vmatpush1.msra.mxu0 0.0
  %62 = vmatprep.subr.mxu0 0.0
  %63 = vmatpush1.msra.mxu0 0.0
  %64 = vmatprep.subr.mxu0 0.0
  %65 = vmatpush1.msra.mxu0 0.0
  %66 = vmatprep.subr.mxu0 0.0
  %67 = vmatpush1.msra.mxu0 0.0
  %68 = vmatprep.subr.mxu0 0.0
  %69 = vmatpush1.msra.mxu0 0.0
  %70 = vmatprep.subr.mxu0 0.0
  %71 = vmatpush1.msra.mxu0 0.0
  %72 = vmatprep.subr.mxu0 0.0
  %73 = vmatpush1.msra.mxu0 0.0
  %74 = vmatprep.subr.mxu0 0.0
  %75 = vmatpush1.msra.mxu0 0.0
  %76 = vmatprep.subr.mxu0 0.0
  %77 = vmatpush1.msra.mxu0 0.0
  %78 = vmatprep.subr.mxu0 0.0
  %79 = vmatpush1.msra.mxu0 0.0
  %80 = vmatprep.subr.mxu0 0.0
  %81 = vmatpush1.msra.mxu0 0.0
  %82 = vmatprep.subr.mxu0 0.0
  %83 = vmatpush1.msra.mxu0 0.0
  %84 = vmatprep.subr.mxu0 0.0
  %85 = vmatpush1.msra.mxu0 0.0
  %86 = vmatprep.subr.mxu0 0.0
  %87 = vmatpush1.msra.mxu0 0.0
  %88 = vmatprep.subr.mxu0 0.0
  %89 = vmatpush1.msra.mxu0 0.0
  %90 = vmatprep.subr.mxu0 0.0
  %91 = vmatpush1.msra.mxu0 0.0
  %92 = vmatprep.subr.mxu0 0.0
  %93 = vmatpush1.msra.mxu0 0.0
  %94 = vmatprep.subr.mxu0 0.0
  %95 = vmatpush1.msra.mxu0 0.0
  %96 = vmatprep.mubr.f32.mxu0 0.0
  %97 = vmatmul.mubr.f32.gmra.mrb[0].mxu0 %v21
  %v98 = vpop.f32.mrb[0].mxu0
  %v99 = vadd.f32 0.0, %v98
  %v100 = vpop.f32.mrb[0].mxu0
  %101 = vmatprep.mubr.f32.mxu0 0.0
  %102 = vmatmul.mubr.f32.gmra.mrb[0].mxu0 %v24
  %v103 = vpop.f32.mrb[0].mxu0
  %v104 = vadd.f32 0.0, %v103
  %v105 = vpop.f32.mrb[0].mxu0
  %106 = vmatprep.mubr.f32.mxu0 0.0
  %107 = vmatmul.mubr.f32.gmra.mrb[0].mxu0 %v27
  %v108 = vpop.f32.mrb[0].mxu0
  %v109 = vadd.f32 0.0, %v108
  %v110 = vpop.f32.mrb[0].mxu0
  %111 = vmatprep.mubr.f32.mxu0 0.0
  %112 = vmatmul.mubr.f32.gmra.mrb[0].mxu0 %v30
  %v113 = vpop.f32.mrb[0].mxu0
  %v114 = vadd.f32 0.0, %v113
  %v115 = vpop.f32.mrb[0].mxu0
  %116 = vdwg.mxu0
  %vm117 = vcmask 64512
  %v118 = vsel %vm117, %v99, -inf
  %119 = vmax.xlane.f32.xlu0 %v118
  %v120 = vpop.xlane.xlu0 %119
  %v121 = vsel %vm117, %v104, -inf
  %122 = vmax.xlane.f32.xlu0 %v121
  %v123 = vpop.xlane.xlu0 %122
  %v124 = vsel %vm117, %v109, -inf
  %125 = vmax.xlane.f32.xlu0 %v124
  %v126 = vpop.xlane.xlu0 %125
  %v127 = vsel %vm117, %v114, -inf
  %128 = vmax.xlane.f32.xlu0 %v127
  %v129 = vpop.xlane.xlu0 %128
  %v130 = vsub.f32 %v99, %v120
  %v131 = vsub.f32 %v104, %v123
  %v132 = vsub.f32 %v109, %v126
  %v133 = vsub.f32 %v114, %v129
  %v134 = vmul.f32 %v130, 1.442695
  %v135 = vpow.pop %v134
  %v136 = vmul.f32 %v131, 1.442695
  %v137 = vpow.pop %v136
  %v138 = vmul.f32 %v132, 1.442695
  %v139 = vpow.pop %v138
  %v140 = vmul.f32 %v133, 1.442695
  %v141 = vpow.pop %v140
  %v142 = vsel %vm117, %v135, 0.0
  %143 = vadd.xlane.f32.xlu0 %v142
  %v144 = vpop.xlane.xlu0 %143
  %v145 = vsel %vm117, %v137, 0.0
  %146 = vadd.xlane.f32.xlu0 %v145
  %v147 = vpop.xlane.xlu0 %146
  %v148 = vsel %vm117, %v139, 0.0
  %149 = vadd.xlane.f32.xlu0 %v148
  %v150 = vpop.xlane.xlu0 %149
  %v151 = vsel %vm117, %v141, 0.0
  %152 = vadd.xlane.f32.xlu0 %v151
  %v153 = vpop.xlane.xlu0 %152
  %v154 = vrcp.pop %v144
  %v155 = vrcp.pop %v147
  %v156 = vrcp.pop %v150
  %v157 = vrcp.pop %v153
  %v158 = vmul.f32 %v135, %v154
  %v159 = vmul.f32 %v137, %v155
  %v160 = vmul.f32 %v139, %v156
  %v161 = vmul.f32 %v141, %v157
  %162 = vst.msk [vmem:[%s2] sm:$0xff] %vm117, %v158
  %163 = vst.msk [vmem:[%s2 + $0x8] sm:$0xff] %vm117, %v159
  %164 = vst.msk [vmem:[%s2 + $0x10] sm:$0xff] %vm117, %v160
  %165 = vst.msk [vmem:[%s2 + $0x18] sm:$0xff] %vm117, %v161
  %s166 = scalar_lea.vmem %s1, 32
  %v167 = vld [vmem:[%s166] sm:$0xff]
  %v168 = vld [vmem:[%s166 + $0x8] sm:$0xff]
  %v169 = vld [vmem:[%s166 + $0x10] sm:$0xff]
  %v170 = vld [vmem:[%s166 + $0x18] sm:$0xff]
  %171 = vmatprep.subr.mxu0 0.0
  %172 = vmatpush1.msra.mxu0 %v167
  %173 = vmatprep.subr.mxu0 0.0
  %174 = vmatpush1.msra.mxu0 %v168
  %175 = vmatprep.subr.mxu0 0.0
  %176 = vmatpush1.msra.mxu0 %v169
  %177 = vmatprep.subr.mxu0 0.0
  %178 = vmatpush1.msra.mxu0 %v170
  %179 = vmatprep.subr.mxu0 0.0
  %180 = vmatpush1.msra.mxu0 0.0
  %181 = vmatprep.subr.mxu0 0.0
  %182 = vmatpush1.msra.mxu0 0.0
  %183 = vmatprep.subr.mxu0 0.0
  %184 = vmatpush1.msra.mxu0 0.0
  %185 = vmatprep.subr.mxu0 0.0
  %186 = vmatpush1.msra.mxu0 0.0
  %187 = vmatprep.subr.mxu0 0.0
  %188 = vmatpush1.msra.mxu0 0.0
  %189 = vmatprep.subr.mxu0 0.0
  %190 = vmatpush1.msra.mxu0 0.0
  %191 = vmatprep.subr.mxu0 0.0
  %192 = vmatpush1.msra.mxu0 0.0
  %193 = vmatprep.subr.mxu0 0.0
  %194 = vmatpush1.msra.mxu0 0.0
  %195 = vmatprep.subr.mxu0 0.0
  %196 = vmatpush1.msra.mxu0 0.0
  %197 = vmatprep.subr.mxu0 0.0
  %198 = vmatpush1.msra.mxu0 0.0
  %199 = vmatprep.subr.mxu0 0.0
  %200 = vmatpush1.msra.mxu0 0.0
  %201 = vmatprep.subr.mxu0 0.0
  %202 = vmatpush1.msra.mxu0 0.0
  %203 = vmatprep.subr.mxu0 0.0
  %204 = vmatpush1.msra.mxu0 0.0
  %205 = vmatprep.subr.mxu0 0.0
  %206 = vmatpush1.msra.mxu0 0.0
  %207 = vmatprep.subr.mxu0 0.0
  %208 = vmatpush1.msra.mxu0 0.0
  %209 = vmatprep.subr.mxu0 0.0
  %210 = vmatpush1.msra.mxu0 0.0
  %211 = vmatprep.subr.mxu0 0.0
  %212 = vmatpush1.msra.mxu0 0.0
  %213 = vmatprep.subr.mxu0 0.0
  %214 = vmatpush1.msra.mxu0 0.0
  %215 = vmatprep.subr.mxu0 0.0
  %216 = vmatpush1.msra.mxu0 0.0
  %217 = vmatprep.subr.mxu0 0.0
  %218 = vmatpush1.msra.mxu0 0.0
  %219 = vmatprep.subr.mxu0 0.0
  %220 = vmatpush1.msra.mxu0 0.0
  %221 = vmatprep.subr.mxu0 0.0
  %222 = vmatpush1.msra.mxu0 0.0
  %223 = vmatprep.subr.mxu0 0.0
  %224 = vmatpush1.msra.mxu0 0.0
  %225 = vmatprep.subr.mxu0 0.0
  %226 = vmatpush1.msra.mxu0 0.0
  %227 = vmatprep.subr.mxu0 0.0
  %228 = vmatpush1.msra.mxu0 0.0
  %229 = vmatprep.subr.mxu0 0.0
  %230 = vmatpush1.msra.mxu0 0.0
  %231 = vmatprep.subr.mxu0 0.0
  %232 = vmatpush1.msra.mxu0 0.0
  %233 = vmatprep.subr.mxu0 0.0
  %234 = vmatpush1.msra.mxu0 0.0
  %235 = vmatprep.mubr.f32.mxu0 0.0
  %236 = vmatmul.mubr.f32.gmra.mrb[0].mxu0 %v21
  %v237 = vpop.f32.mrb[0].mxu0
  %v238 = vadd.f32 0.0, %v237
  %v239 = vpop.f32.mrb[0].mxu0
  %240 = vmatprep.mubr.f32.mxu0 0.0
  %241 = vmatmul.mubr.f32.gmra.mrb[0].mxu0 %v24
  %v242 = vpop.f32.mrb[0].mxu0
  %v243 = vadd.f32 0.0, %v242
  %v244 = vpop.f32.mrb[0].mxu0
  %245 = vmatprep.mubr.f32.mxu0 0.0
  %246 = vmatmul.mubr.f32.gmra.mrb[0].mxu0 %v27
  %v247 = vpop.f32.mrb[0].mxu0
  %v248 = vadd.f32 0.0, %v247
  %v249 = vpop.f32.mrb[0].mxu0
  %250 = vmatprep.mubr.f32.mxu0 0.0
  %251 = vmatmul.mubr.f32.gmra.mrb[0].mxu0 %v30
  %v252 = vpop.f32.mrb[0].mxu0
  %v253 = vadd.f32 0.0, %v252
  %v254 = vpop.f32.mrb[0].mxu0
  %255 = vdwg.mxu0
  %v256 = vsel %vm117, %v238, -inf
  %257 = vmax.xlane.f32.xlu0 %v256
  %v258 = vpop.xlane.xlu0 %257
  %v259 = vsel %vm117, %v243, -inf
  %260 = vmax.xlane.f32.xlu0 %v259
  %v261 = vpop.xlane.xlu0 %260
  %v262 = vsel %vm117, %v248, -inf
  %263 = vmax.xlane.f32.xlu0 %v262
  %v264 = vpop.xlane.xlu0 %263
  %v265 = vsel %vm117, %v253, -inf
  %266 = vmax.xlane.f32.xlu0 %v265
  %v267 = vpop.xlane.xlu0 %266
  %v268 = vsub.f32 %v238, %v258
  %v269 = vsub.f32 %v243, %v261
  %v270 = vsub.f32 %v248, %v264
  %v271 = vsub.f32 %v253, %v267
  %v272 = vmul.f32 %v268, 1.442695
  %v273 = vpow.pop %v272
  %v274 = vmul.f32 %v269, 1.442695
  %v275 = vpow.pop %v274
  %v276 = vmul.f32 %v270, 1.442695
  %v277 = vpow.pop %v276
  %v278 = vmul.f32 %v271, 1.442695
  %v279 = vpow.pop %v278
  %v280 = vsel %vm117, %v273, 0.0
  %281 = vadd.xlane.f32.xlu0 %v280
  %v282 = vpop.xlane.xlu0 %281
  %v283 = vsel %vm117, %v275, 0.0
  %284 = vadd.xlane.f32.xlu0 %v283
  %v285 = vpop.xlane.xlu0 %284
  %v286 = vsel %vm117, %v277, 0.0
  %287 = vadd.xlane.f32.xlu0 %v286
  %v288 = vpop.xlane.xlu0 %287
  %v289 = vsel %vm117, %v279, 0.0
  %290 = vadd.xlane.f32.xlu0 %v289
  %v291 = vpop.xlane.xlu0 %290
  %v292 = vrcp.pop %v282
  %v293 = vrcp.pop %v285
  %v294 = vrcp.pop %v288
  %v295 = vrcp.pop %v291
  %v296 = vmul.f32 %v273, %v292
  %v297 = vmul.f32 %v275, %v293
  %v298 = vmul.f32 %v277, %v294
  %v299 = vmul.f32 %v279, %v295
  %s300 = scalar_lea.vmem %s2, 32
  %301 = vst.msk [vmem:[%s300] sm:$0xff] %vm117, %v296
  %302 = vst.msk [vmem:[%s300 + $0x8] sm:$0xff] %vm117, %v297
  %303 = vst.msk [vmem:[%s300 + $0x10] sm:$0xff] %vm117, %v298
  %304 = vst.msk [vmem:[%s300 + $0x18] sm:$0xff] %vm117, %v299
  // Predicated region
  $region10: #{tpu_custom_call.1} parent=0 // pred_check
    _
  $region11: #{tpu_custom_call.1} parent=0 // pred_check_branch
    %306 = sbr.rel (0) target = $region13
  $region12: #{tpu_custom_call.1} parent=0 // pred_region
    _
  $region13: #{tpu_custom_call.1} parent=0 // pred_fallthru
    _
  // Predicated region
  $region14: #{tpu_custom_call.1} parent=0 // pred_check
    _
  $region15: #{tpu_custom_call.1} parent=0 // pred_check_branch
    %308 = sbr.rel (0) target = $region17
  $region16: #{tpu_custom_call.1} parent=0 // pred_region
    _
  $region17: #{tpu_custom_call.1} parent=0 // pred_fallthru
    _

</llo_original>
